<compile_context>
chip_gen: v5e
topology: v5e:2x2
jax: 0.10.0
libtpu: 0.0.40
codegen_flags: <defaults>
</compile_context>

<pallas_src>
import jax
import jax.numpy as jnp
from jax.experimental import pallas as pl
from jax.experimental.pallas import tpu as pltpu

_INV_SQRT2 = 0.7071067811865476


def _round_up(x, m):
    return ((x + m - 1) // m) * m


def _gelu_exact_f32(g):
    # Exact (erf) GELU, matching torch.nn.functional.gelu(approximate="none").
    # TODO(synk): on v6e/v7x bf16 models the exact-erf GEGLU can saturate the VALU;
    # switch to the tanh-approx GELU (EUP slot) if the model tolerates ~1e-3 deviation.
    return 0.5 * g * (1.0 + jax.lax.erf(g * jnp.float32(_INV_SQRT2)))


def _ffn_resident_kernel(x_ref, w1a_ref, w1g_ref, b1a_ref, b1g_ref, w2_ref, b2_ref, o_ref):
    # x_ref: (tm, dim); w1a/w1g: (dim, dff); b1a/b1g: (1, dff); w2: (dff, dim_out);
    # b2: (1, dim_out); o_ref: (tm, dim_out).
    x = x_ref[...]
    a = jnp.dot(x, w1a_ref[...], preferred_element_type=jnp.float32) + b1a_ref[...]
    g = jnp.dot(x, w1g_ref[...], preferred_element_type=jnp.float32) + b1g_ref[...]
    y = (a * _gelu_exact_f32(g)).astype(x_ref.dtype)
    out = jnp.dot(y, w2_ref[...], preferred_element_type=jnp.float32) + b2_ref[...]
    o_ref[...] = out.astype(o_ref.dtype)
    # Dropout(p=0.0) in the reference module is an identity — nothing to do.


def _ffn_dff_tiled_kernel(x_ref, w1a_ref, w1g_ref, b1a_ref, b1g_ref, w2_ref, b2_ref,
                          o_ref, acc_ref):
    # Grid axis 1 streams dff chunks; acc_ref: (tm, dim_out) f32 accumulator in scratch.
    k = pl.program_id(1)

    @pl.when(k == 0)
    def _():
        acc_ref[...] = jnp.zeros_like(acc_ref)

    x = x_ref[...]
    a = jnp.dot(x, w1a_ref[...], preferred_element_type=jnp.float32) + b1a_ref[...]
    g = jnp.dot(x, w1g_ref[...], preferred_element_type=jnp.float32) + b1g_ref[...]
    y = (a * _gelu_exact_f32(g)).astype(x_ref.dtype)
    acc_ref[...] += jnp.dot(y, w2_ref[...], preferred_element_type=jnp.float32)

    @pl.when(k == pl.num_programs(1) - 1)
    def _():
        o_ref[...] = (acc_ref[...] + b2_ref[...]).astype(o_ref.dtype)


def feedforward_pallas(x, w1, b1, w2, b2, *, tm=512, tk_target=1024,
                       force_tiled=False, tk_override=None):
    """x: (B, N, dim); w1: (dim, 2*dff); b1: (2*dff,); w2: (dff, dim); b2: (dim,)."""
    B, N, dim = x.shape
    dff2 = w1.shape[1]
    dff = dff2 // 2
    M = B * N
    dtype = x.dtype
    itemsize = dtype.itemsize

    # bf16 fast path end-to-end: weights/biases must match the activation dtype.
    w1 = w1.astype(dtype)
    b1 = b1.astype(dtype)
    w2 = w2.astype(dtype)
    b2 = b2.astype(dtype)

    # Lane-dense output: pad the output feature dim to a multiple of 128 so output
    # stores are unmasked vst (padded columns sliced off afterwards; no-op when
    # dim is already a multiple of 128).
    dim_out = _round_up(dim, 128)
    if dim_out != dim:
        w2 = jnp.pad(w2, ((0, 0), (0, dim_out - dim)))
        b2 = jnp.pad(b2, (0, dim_out - dim))
    b2_2d = b2.reshape(1, dim_out)

    # Row tile: sublane-packing aligned (8 f32 / 16 bf16 / 32 i8), shrunk for tiny
    # inputs, and split so the "parallel" row axis has >= 2 steps (v7x: 2 TC/chip).
    sub = max(8, (8 * 4) // itemsize)
    tm = max(sub, min(tm, _round_up(M, sub)))
    while _round_up(M, tm) // tm < 2 and tm >= 2 * sub:
        tm = max(sub, _round_up(tm // 2, sub))
    M_pad = _round_up(M, tm)

    x2d = x.reshape(M, dim)
    if M_pad != M:
        # Zero-padded rows are benign (erf(0)=0, no NaNs); outputs are discarded below.
        x2d = jnp.pad(x2d, ((0, M_pad - M), (0, 0)))

    # ---- VMEM budget -> strategy -------------------------------------------
    try:
        vmem_cap = int(pltpu.get_tpu_info().vmem_capacity_bytes)
    except Exception:
        vmem_cap = 64 << 20  # conservative (v7x per-TC) fallback

    # Resident weight footprint with single-buffered specs.
    weight_bytes = (dim * dff2 + dff2 + dff * dim_out + dim_out) * itemsize
    direct_halves = (dff % 128 == 0)  # address w1/b1 halves straight from HBM blocks

    use_tiled = direct_halves and (force_tiled or weight_bytes > int(0.55 * vmem_cap))
    tk = dff
    if use_tiled:
        if tk_override is not None:
            tk = tk_override
        else:
            cand = (min(tk_target, dff) // 128) * 128
            tk = None
            while cand >= 128:
                if dff % cand == 0:
                    tk = cand
                    break
                cand -= 128
            if tk is None:
                tk, use_tiled = dff, False
        if use_tiled and (tk % 128 != 0 or dff % tk != 0):
            tk, use_tiled = dff, False

    f32 = 4
    cost = pl.CostEstimate(
        flops=2 * M * dim * dff2 + 2 * M * dff * dim,
        transcendentals=M * dff,
        bytes_accessed=(M * dim + dim * dff2 + dff2 + dff * dim_out + dim_out
                        + M * dim_out) * itemsize,
    )

    if use_tiled:
        nk = dff // tk
        vmem_needed = (
            2 * tm * dim * itemsize                 # x tile (double-buffered)
            + 2 * tm * dim_out * itemsize           # out tile (double-buffered)
            + 2 * 2 * (dim * tk + tk) * itemsize    # w1/b1 value+gate chunks (x2 buffers)
            + 2 * tk * dim_out * itemsize           # w2 chunk (double-buffered)
            + dim_out * itemsize                    # b2 (single-buffered)
            + tm * dim_out * f32                    # f32 accumulator scratch
            + tm * (2 * tk) * f32 + tm * tk * itemsize + tm * dim_out * f32  # intermediates
        )
        vmem_limit = int(min(0.85 * vmem_cap, max(32 << 20, 1.5 * vmem_needed)))

        grid = (M_pad // tm, nk)
        b1_2d = b1.reshape(1, dff2)
        in_specs = [
            pl.BlockSpec((tm, dim), lambda i, k: (i, 0)),                       # x rows
            pl.BlockSpec((dim, tk), lambda i, k: (0, k)),                       # w1 value chunk
            pl.BlockSpec((dim, tk), lambda i, k, _nk=nk: (0, _nk + k)),         # w1 gate chunk
            pl.BlockSpec((1, tk), lambda i, k: (0, k)),                         # b1 value chunk
            pl.BlockSpec((1, tk), lambda i, k, _nk=nk: (0, _nk + k)),           # b1 gate chunk
            pl.BlockSpec((tk, dim_out), lambda i, k: (k, 0)),                   # w2 chunk
            pl.BlockSpec((1, dim_out), lambda i, k: (0, 0),
                         pipeline_mode=pl.Buffered(1)),                         # b2 (resident)
        ]
        out_spec = pl.BlockSpec((tm, dim_out), lambda i, k: (i, 0))
        scratch = [pltpu.VMEM((tm, dim_out), jnp.float32)]
        args = (x2d, w1, w1, b1_2d, b1_2d, w2, b2_2d)
        kernel = _ffn_dff_tiled_kernel
        dims = ("parallel", "arbitrary")
    else:
        vmem_needed = (
            weight_bytes                                   # single-buffered resident weights
            + 2 * tm * dim * itemsize                      # x tile (double-buffered)
            + 2 * tm * dim_out * itemsize                  # out tile (double-buffered)
            + tm * (2 * dff) * f32 + tm * dff * itemsize + tm * dim_out * f32  # intermediates
        )
        vmem_limit = int(min(0.85 * vmem_cap, max(32 << 20, 1.5 * vmem_needed)))

        grid = (M_pad // tm,)
        one = pl.Buffered(1)
        if direct_halves:
            # Read the two halves of w1 / b1 directly from the original arrays: the
            # same buffer is passed twice with block indices (0,0) / (0,1) — no
            # wrapper-side HBM copy.
            b1_2d = b1.reshape(1, dff2)
            in_specs = [
                pl.BlockSpec((tm, dim), lambda i: (i, 0)),                        # x rows
                pl.BlockSpec((dim, dff), lambda i: (0, 0), pipeline_mode=one),    # w1 value half
                pl.BlockSpec((dim, dff), lambda i: (0, 1), pipeline_mode=one),    # w1 gate half
                pl.BlockSpec((1, dff), lambda i: (0, 0), pipeline_mode=one),      # b1 value half
                pl.BlockSpec((1, dff), lambda i: (0, 1), pipeline_mode=one),      # b1 gate half
                pl.BlockSpec((dff, dim_out), lambda i: (0, 0), pipeline_mode=one),  # w2
                pl.BlockSpec((1, dim_out), lambda i: (0, 0), pipeline_mode=one),    # b2
            ]
            args = (x2d, w1, w1, b1_2d, b1_2d, w2, b2_2d)
        else:
            # dff not lane-aligned: fall back to wrapper-side slicing of w1 / b1.
            w1_a, w1_g = w1[:, :dff], w1[:, dff:]
            b1_a, b1_g = b1[:dff].reshape(1, dff), b1[dff:].reshape(1, dff)
            in_specs = [
                pl.BlockSpec((tm, dim), lambda i: (i, 0)),
                pl.BlockSpec((dim, dff), lambda i: (0, 0), pipeline_mode=one),
                pl.BlockSpec((dim, dff), lambda i: (0, 0), pipeline_mode=one),
                pl.BlockSpec((1, dff), lambda i: (0, 0), pipeline_mode=one),
                pl.BlockSpec((1, dff), lambda i: (0, 0), pipeline_mode=one),
                pl.BlockSpec((dff, dim_out), lambda i: (0, 0), pipeline_mode=one),
                pl.BlockSpec((1, dim_out), lambda i: (0, 0), pipeline_mode=one),
            ]
            args = (x2d, w1_a, w1_g, b1_a, b1_g, w2, b2_2d)
        out_spec = pl.BlockSpec((tm, dim_out), lambda i: (i, 0))
        scratch = []
        kernel = _ffn_resident_kernel
        dims = ("parallel",)

    out2d = pl.pallas_call(
        kernel,
        out_shape=jax.ShapeDtypeStruct((M_pad, dim_out), dtype),
        grid_spec=pltpu.PrefetchScalarGridSpec(
            num_scalar_prefetch=0,
            grid=grid,
            in_specs=in_specs,
            out_specs=out_spec,
            scratch_shapes=scratch,
        ),
        compiler_params=pltpu.CompilerParams(
            dimension_semantics=dims,
            vmem_limit_bytes=vmem_limit,
        ),
        cost_estimate=cost,
    )(*args)

    if M_pad != M or dim_out != dim:
        out2d = out2d[:M, :dim]
    return out2d.reshape(B, N, dim)


def feedforward_ref(x, w1, b1, w2, b2):
    """Pure-JAX reference matching the PyTorch module semantics."""
    h = jnp.einsum("bnd,df->bnf", x, w1) + b1
    dff = h.shape[-1] // 2
    a, g = h[..., :dff], h[..., dff:]
    y = a * (0.5 * g * (1.0 + jax.lax.erf(g / jnp.sqrt(2.0))))
    return jnp.einsum("bnf,fd->bnd", y, w2) + b2


if __name__ == "__main__":
    B, N, dim = 2, 8, 32
    key = jax.random.PRNGKey(0)

    def make_params(k, d_in, dff):
        k1, k2, k3, k4 = jax.random.split(k, 4)
        bound1 = 1.0 / jnp.sqrt(d_in)
        w1 = jax.random.uniform(k1, (d_in, 2 * dff), jnp.float32, -bound1, bound1)
        b1 = jax.random.uniform(k2, (2 * dff,), jnp.float32, -bound1, bound1)
        bound2 = 1.0 / jnp.sqrt(dff)
        w2 = jax.random.uniform(k3, (dff, d_in), jnp.float32, -bound2, bound2)
        b2 = jax.random.uniform(k4, (d_in,), jnp.float32, -bound2, bound2)
        return w1, b1, w2, b2

    kx, kp1, kp2 = jax.random.split(key, 3)
    x = jax.random.normal(kx, (B, N, dim), dtype=jnp.float32)

    # 1) Resident-weight path (default policy), dim_feedforward=128 as in the module default.
    dff = 128
    w1, b1, w2, b2 = make_params(kp1, dim, dff)
    out = jax.block_until_ready(feedforward_pallas(x, w1, b1, w2, b2))
    ref = feedforward_ref(x, w1, b1, w2, b2)
    assert out.shape == (B, N, dim)
    assert jnp.allclose(out, ref, atol=1e-5, rtol=1e-5), "resident path mismatch vs reference"

    # 2) dff-tiled accumulator path (the large-shape / v7x strategy), forced at small shapes
    #    with two dff chunks so the pl.when init/accumulate/finalize logic is exercised.
    dff = 256
    w1, b1, w2, b2 = make_params(kp2, dim, dff)
    out_t = jax.block_until_ready(
        feedforward_pallas(x, w1, b1, w2, b2, force_tiled=True, tk_override=128))
    ref_t = feedforward_ref(x, w1, b1, w2, b2)
    assert out_t.shape == (B, N, dim)
    assert jnp.allclose(out_t, ref_t, atol=1e-5, rtol=1e-5), "tiled path mismatch vs reference"

    print("KERNEL_OK")
</pallas_src>

<mosaic_0001>
module attributes {stable_mosaic.version = 11 : i64} {
  func.func @_ffn_resident_kernel(%arg0: i32, %arg1: memref<8x32xf32, #tpu.memory_space<vmem>>, %arg2: memref<32x128xf32, #tpu.memory_space<vmem>>, %arg3: memref<32x128xf32, #tpu.memory_space<vmem>>, %arg4: memref<1x128xf32, #tpu.memory_space<vmem>>, %arg5: memref<1x128xf32, #tpu.memory_space<vmem>>, %arg6: memref<128x128xf32, #tpu.memory_space<vmem>>, %arg7: memref<1x128xf32, #tpu.memory_space<vmem>>, %arg8: memref<8x128xf32, #tpu.memory_space<vmem>>) attributes {dimension_semantics = [#tpu.dimension_semantics<parallel>], iteration_bounds = array<i64: 2>, scalar_prefetch = 0 : i64, scratch_operands = 0 : i64, tpu.core_type = #tpu.core_type<tc>, window_params = [{transform_indices = @transform_0, window_bounds = array<i64: 8, 32>}, {pipeline_mode = #tpu.pipeline_mode<synchronous>, transform_indices = @transform_1, window_bounds = array<i64: 32, 128>}, {pipeline_mode = #tpu.pipeline_mode<synchronous>, transform_indices = @transform_2, window_bounds = array<i64: 32, 128>}, {pipeline_mode = #tpu.pipeline_mode<synchronous>, transform_indices = @transform_3, window_bounds = array<i64: 1, 128>}, {pipeline_mode = #tpu.pipeline_mode<synchronous>, transform_indices = @transform_4, window_bounds = array<i64: 1, 128>}, {pipeline_mode = #tpu.pipeline_mode<synchronous>, transform_indices = @transform_5, window_bounds = array<i64: 128, 128>}, {pipeline_mode = #tpu.pipeline_mode<synchronous>, transform_indices = @transform_6, window_bounds = array<i64: 1, 128>}, {transform_indices = @transform_7, window_bounds = array<i64: 8, 128>}]} {
    %c0 = arith.constant 0 : index
    %c0_0 = arith.constant 0 : index
    %0 = vector.load %arg1[%c0, %c0_0] : memref<8x32xf32, #tpu.memory_space<vmem>>, vector<8x32xf32>
    %c0_1 = arith.constant 0 : index
    %c0_2 = arith.constant 0 : index
    %1 = vector.load %arg2[%c0_1, %c0_2] : memref<32x128xf32, #tpu.memory_space<vmem>>, vector<32x128xf32>
    %cst = arith.constant dense<0.000000e+00> : vector<8x128xf32>
    %2 = tpu.matmul %0, %1, %cst {dimension_numbers = #tpu.dot_dimension_numbers<[1], [0], [0], [1], [0, 0, 1, 1], [], []>} : vector<8x32xf32>, vector<32x128xf32>, vector<8x128xf32> -> vector<8x128xf32>
    %c0_3 = arith.constant 0 : index
    %c0_4 = arith.constant 0 : index
    %3 = vector.load %arg4[%c0_3, %c0_4] : memref<1x128xf32, #tpu.memory_space<vmem>>, vector<1x128xf32>
    %4 = vector.broadcast %3 : vector<1x128xf32> to vector<8x128xf32>
    %5 = arith.addf %2, %4 : vector<8x128xf32>
    %c0_5 = arith.constant 0 : index
    %c0_6 = arith.constant 0 : index
    %6 = vector.load %arg3[%c0_5, %c0_6] : memref<32x128xf32, #tpu.memory_space<vmem>>, vector<32x128xf32>
    %cst_7 = arith.constant dense<0.000000e+00> : vector<8x128xf32>
    %7 = tpu.matmul %0, %6, %cst_7 {dimension_numbers = #tpu.dot_dimension_numbers<[1], [0], [0], [1], [0, 0, 1, 1], [], []>} : vector<8x32xf32>, vector<32x128xf32>, vector<8x128xf32> -> vector<8x128xf32>
    %c0_8 = arith.constant 0 : index
    %c0_9 = arith.constant 0 : index
    %8 = vector.load %arg5[%c0_8, %c0_9] : memref<1x128xf32, #tpu.memory_space<vmem>>, vector<1x128xf32>
    %9 = vector.broadcast %8 : vector<1x128xf32> to vector<8x128xf32>
    %10 = arith.addf %7, %9 : vector<8x128xf32>
    %cst_10 = arith.constant 5.000000e-01 : f32
    %11 = vector.broadcast %cst_10 : f32 to vector<8x128xf32>
    %12 = arith.mulf %11, %10 : vector<8x128xf32>
    %cst_11 = arith.constant 0.707106769 : f32
    %13 = vector.broadcast %cst_11 : f32 to vector<8x128xf32>
    %14 = arith.mulf %10, %13 : vector<8x128xf32>
    %15 = math.erf %14 : vector<8x128xf32>
    %cst_12 = arith.constant 1.000000e+00 : f32
    %16 = vector.broadcast %cst_12 : f32 to vector<8x128xf32>
    %17 = arith.addf %16, %15 : vector<8x128xf32>
    %18 = arith.mulf %12, %17 : vector<8x128xf32>
    %19 = arith.mulf %5, %18 : vector<8x128xf32>
    %c0_13 = arith.constant 0 : index
    %c0_14 = arith.constant 0 : index
    %20 = vector.load %arg6[%c0_13, %c0_14] : memref<128x128xf32, #tpu.memory_space<vmem>>, vector<128x128xf32>
    %cst_15 = arith.constant dense<0.000000e+00> : vector<8x128xf32>
    %21 = tpu.matmul %19, %20, %cst_15 {dimension_numbers = #tpu.dot_dimension_numbers<[1], [0], [0], [1], [0, 0, 1, 1], [], []>} : vector<8x128xf32>, vector<128x128xf32>, vector<8x128xf32> -> vector<8x128xf32>
    %c0_16 = arith.constant 0 : index
    %c0_17 = arith.constant 0 : index
    %22 = vector.load %arg7[%c0_16, %c0_17] : memref<1x128xf32, #tpu.memory_space<vmem>>, vector<1x128xf32>
    %23 = vector.broadcast %22 : vector<1x128xf32> to vector<8x128xf32>
    %24 = arith.addf %21, %23 : vector<8x128xf32>
    %c0_18 = arith.constant 0 : index
    %c0_19 = arith.constant 0 : index
    %25 = vector.load %arg8[%c0_18, %c0_19] : memref<8x128xf32, #tpu.memory_space<vmem>>, vector<8x128xf32>
    tpu.vector_store %arg8[%c0_18, %c0_19], %24 {strides = array<i32>} : memref<8x128xf32, #tpu.memory_space<vmem>>, vector<8x128xf32>,
    return
  }
  func.func @transform_0(%arg0: i32) -> (i32, i32) {
    %c0_i32 = arith.constant 0 : i32
    %c0_i32_0 = arith.constant 0 : i32
    return %arg0, %c0_i32 : i32, i32
  }
  func.func @transform_1(%arg0: i32) -> (i32, i32) {
    %c0_i32 = arith.constant 0 : i32
    %c0_i32_0 = arith.constant 0 : i32
    %c0_i32_1 = arith.constant 0 : i32
    return %c0_i32, %c0_i32_0 : i32, i32
  }
  func.func @transform_2(%arg0: i32) -> (i32, i32) {
    %c0_i32 = arith.constant 0 : i32
    %c1_i32 = arith.constant 1 : i32
    %c0_i32_0 = arith.constant 0 : i32
    return %c0_i32, %c1_i32 : i32, i32
  }
  func.func @transform_3(%arg0: i32) -> (i32, i32) {
    %c0_i32 = arith.constant 0 : i32
    %c0_i32_0 = arith.constant 0 : i32
    %c0_i32_1 = arith.constant 0 : i32
    return %c0_i32, %c0_i32_0 : i32, i32
  }
  func.func @transform_4(%arg0: i32) -> (i32, i32) {
    %c0_i32 = arith.constant 0 : i32
    %c1_i32 = arith.constant 1 : i32
    %c0_i32_0 = arith.constant 0 : i32
    return %c0_i32, %c1_i32 : i32, i32
  }
  func.func @transform_5(%arg0: i32) -> (i32, i32) {
    %c0_i32 = arith.constant 0 : i32
    %c0_i32_0 = arith.constant 0 : i32
    %c0_i32_1 = arith.constant 0 : i32
    return %c0_i32, %c0_i32_0 : i32, i32
  }
  func.func @transform_6(%arg0: i32) -> (i32, i32) {
    %c0_i32 = arith.constant 0 : i32
    %c0_i32_0 = arith.constant 0 : i32
    %c0_i32_1 = arith.constant 0 : i32
    return %c0_i32, %c0_i32_0 : i32, i32
  }
  func.func @transform_7(%arg0: i32) -> (i32, i32) {
    %c0_i32 = arith.constant 0 : i32
    %c0_i32_0 = arith.constant 0 : i32
    return %arg0, %c0_i32 : i32, i32
  }
}

</mosaic_0001>

<llo_original>
// kernel: tpu_custom_call.1
$region0: #{tpu_custom_call.1}
  #allocation0 [shape = 'u32[]', space=smem, size = 0x4, offset = 0x4, fixed_abs, tag = 'smem constant byte address 0x4 - core index']
  #allocation1 [shape = 'u32[72,128]{1,0:T(1,128)}', space=vmem, size = 0x9000, scoped, tag = 'internal scratch']
  %s0 = inlined_call_operand.hbm [shape: f32[16,32], index: 0, kind: input, shape index: {}]
  %s1 = inlined_call_operand.hbm [shape: f32[32,256], index: 1, kind: input, shape index: {}]
  %s2 = inlined_call_operand.hbm [shape: f32[32,256], index: 2, kind: input, shape index: {}]
  %s3 = inlined_call_operand.vmem [shape: f32[1,256], index: 3, kind: input, shape index: {}]
  %s4 = inlined_call_operand.hbm [shape: f32[1,256], index: 4, kind: input, shape index: {}]
  %s5 = inlined_call_operand.hbm [shape: f32[128,128], index: 5, kind: input, shape index: {}]
  %s6 = inlined_call_operand.vmem [shape: f32[1,128], index: 6, kind: input, shape index: {}]
  %s7 = inlined_call_operand.hbm [shape: f32[16,128], index: 7, kind: output, shape index: {}]
  %s8 = sld [smem:[#allocation0]]
  $region81: #{tpu_custom_call.1} parent=0
    _
  %s10 = ssub.s32 1, %s8
  %s11 = scalar_select 0, %s10, %s8
  $region1: #{tpu_custom_call.1} parent=0
    #allocation2 [shape = 'u8[8192]{0}', space=vmem, size = 0x2000, scoped, tag = 'input window, operand 0']
    #allocation3 [shape = 's32[2]{0}', space=sflag, size = 0x8, scoped, tag = 'scoped memory for tpu_custom_call.1']
    #allocation4 [shape = 's32[2]{0}', space=sflag, size = 0x8, scoped, tag = 'scoped memory for tpu_custom_call.1']
    #allocation5 [shape = 'u8[16384]{0}', space=vmem, size = 0x4000, scoped, tag = 'input window, operand 1, single buffered']
    #allocation6 [shape = 's32[1]{0}', space=sflag, size = 0x4, scoped, tag = 'scoped memory for tpu_custom_call.1']
    #allocation7 [shape = 'u8[16384]{0}', space=vmem, size = 0x4000, scoped, tag = 'input window, operand 2, single buffered']
    #allocation8 [shape = 'u8[512]{0}', space=vmem, size = 0x400, scoped, tag = 'input window, operand 4, single buffered']
    #allocation9 [shape = 's32[1]{0}', space=sflag, size = 0x4, scoped, tag = 'scoped memory for tpu_custom_call.1']
    #allocation10 [shape = 'u8[65536]{0}', space=vmem, size = 0x10000, scoped, tag = 'input window, operand 5, single buffered']
    #allocation11 [shape = 'u8[8192]{0}', space=vmem, size = 0x2000, scoped, tag = 'output window, operand 0']
    %12 = vsyncpa [#allocation3], 0
    %s13 = scalar_lea.sflag [#allocation3], 1
    %14 = vsyncpa %s13, 0
    %15 = vsyncpa [#allocation6], 0
    %16 = vsyncpa [#allocation9], 0
    %17 = vsyncpa [#allocation4], 0
    %s18 = scalar_lea.sflag [#allocation4], 1
    %19 = vsyncpa %s18, 0
    loop: start=0, step=1, limit=4
    $region2: #{tpu_custom_call.1} parent=1 // loop_pre_header
      _
    $region3: #{tpu_custom_call.1} parent=1 // loop_header
      %s21 = sphi 0, %s25
      %p22 = scmp.ge.s32.totalorder %s21, 4
      %s31 = sphi 0, %s33
      %s34 = sphi 0, %s31
      %s35 = sphi 0, %s34
      %s51 = sphi 0, %s35
      %s55 = sphi 0, %s55
      %s57 = sphi 0, %s55
      %s58 = sphi 0, %s57
      %s72 = sphi 0, %s58
      %s76 = sphi 0, %s76
      %s78 = sphi 0, %s76
      %s79 = sphi 0, %s78
      %s93 = sphi 0, %s79
      %s97 = sphi 0, %s97
      %s99 = sphi 0, %s97
      %s100 = sphi 0, %s99
      %s114 = sphi 0, %s100
      %s118 = sphi 0, %s118
      %s120 = sphi 0, %s118
      %s121 = sphi 0, %s120
      %s135 = sphi 0, %s121
      %s139 = sphi 0, %s139
      %s141 = sphi 0, %s139
      %s142 = sphi 0, %s141
      %s156 = sphi 0, %s142
      %s160 = sphi 0, %s160
      %s162 = sphi 0, %s160
      %s163 = sphi 0, %s162
      %s177 = sphi 0, %s163
      %s183 = sphi 0, %s185
      %s186 = sphi 0, %s183
      %s187 = sphi 0, %s186
      %s203 = sphi 0, %s187
    $region4: #{tpu_custom_call.1} parent=1 // loop_header_branch
      %24 = sbr.rel (%p22) target = $region8
    $region5: #{tpu_custom_call.1} parent=1 // loop_body
      %s26 = ssub.s32 %s21, 1
      %s27 = ssub.s32 %s21, 2
      %s28 = sadd.s32 %s21, 1
      %s29 = ssub.s32 %s21, %s28
      %p30 = scmp.eq.s32.totalorder %s29, 0
      %s32 = sadd.s32 %s31, 1
      %s33 = scalar_select %p30, %s31, %s32
      %p36 = pneg %p30
      %p37 = scmp.eq.s32.totalorder %s21, 1
      %p38 = por %p36, %p37
      %p39 = scmp.ne.s32.totalorder %s31, %s34
      %p40 = scmp.eq.s32.totalorder %s21, 0
      %p41 = por %p39, %p40
      %p42 = scmp.ne.s32.totalorder %s31, %s34
      %p43 = scmp.eq.s32.totalorder %s26, 1
      %p44 = por %p42, %p43
      %p45 = scmp.ne.s32.totalorder %s34, %s35
      %p46 = scmp.eq.s32.totalorder %s26, 0
      %p47 = por %p45, %p46
      %p48 = scmp.ne.s32.totalorder %s34, %s35
      %p49 = scmp.eq.s32.totalorder %s27, 1
      %p50 = por %p48, %p49
      %p52 = scmp.ne.s32.totalorder %s35, %s51
      %p53 = scmp.eq.s32.totalorder %s27, 0
      %p54 = por %p52, %p53
      %s56 = sadd.s32 %s55, 1
      %p59 = scmp.eq.s32.totalorder %s21, 1
      %p60 = scmp.ne.s32.totalorder %s55, %s57
      %p61 = scmp.eq.s32.totalorder %s21, 0
      %p62 = por %p60, %p61
      %p63 = scmp.ne.s32.totalorder %s55, %s57
      %p64 = scmp.eq.s32.totalorder %s26, 1
      %p65 = por %p63, %p64
      %p66 = scmp.ne.s32.totalorder %s57, %s58
      %p67 = scmp.eq.s32.totalorder %s26, 0
      %p68 = por %p66, %p67
      %p69 = scmp.ne.s32.totalorder %s57, %s58
      %p70 = scmp.eq.s32.totalorder %s27, 1
      %p71 = por %p69, %p70
      %p73 = scmp.ne.s32.totalorder %s58, %s72
      %p74 = scmp.eq.s32.totalorder %s27, 0
      %p75 = por %p73, %p74
      %s77 = sadd.s32 %s76, 1
      %p80 = scmp.eq.s32.totalorder %s21, 1
      %p81 = scmp.ne.s32.totalorder %s76, %s78
      %p82 = scmp.eq.s32.totalorder %s21, 0
      %p83 = por %p81, %p82
      %p84 = scmp.ne.s32.totalorder %s76, %s78
      %p85 = scmp.eq.s32.totalorder %s26, 1
      %p86 = por %p84, %p85
      %p87 = scmp.ne.s32.totalorder %s78, %s79
      %p88 = scmp.eq.s32.totalorder %s26, 0
      %p89 = por %p87, %p88
      %p90 = scmp.ne.s32.totalorder %s78, %s79
      %p91 = scmp.eq.s32.totalorder %s27, 1
      %p92 = por %p90, %p91
      %p94 = scmp.ne.s32.totalorder %s79, %s93
      %p95 = scmp.eq.s32.totalorder %s27, 0
      %p96 = por %p94, %p95
      %s98 = sadd.s32 %s97, 1
      %p101 = scmp.eq.s32.totalorder %s21, 1
      %p102 = scmp.ne.s32.totalorder %s97, %s99
      %p103 = scmp.eq.s32.totalorder %s21, 0
      %p104 = por %p102, %p103
      %p105 = scmp.ne.s32.totalorder %s97, %s99
      %p106 = scmp.eq.s32.totalorder %s26, 1
      %p107 = por %p105, %p106
      %p108 = scmp.ne.s32.totalorder %s99, %s100
      %p109 = scmp.eq.s32.totalorder %s26, 0
      %p110 = por %p108, %p109
      %p111 = scmp.ne.s32.totalorder %s99, %s100
      %p112 = scmp.eq.s32.totalorder %s27, 1
      %p113 = por %p111, %p112
      %p115 = scmp.ne.s32.totalorder %s100, %s114
      %p116 = scmp.eq.s32.totalorder %s27, 0
      %p117 = por %p115, %p116
      %s119 = sadd.s32 %s118, 1
      %p122 = scmp.eq.s32.totalorder %s21, 1
      %p123 = scmp.ne.s32.totalorder %s118, %s120
      %p124 = scmp.eq.s32.totalorder %s21, 0
      %p125 = por %p123, %p124
      %p126 = scmp.ne.s32.totalorder %s118, %s120
      %p127 = scmp.eq.s32.totalorder %s26, 1
      %p128 = por %p126, %p127
      %p129 = scmp.ne.s32.totalorder %s120, %s121
      %p130 = scmp.eq.s32.totalorder %s26, 0
      %p131 = por %p129, %p130
      %p132 = scmp.ne.s32.totalorder %s120, %s121
      %p133 = scmp.eq.s32.totalorder %s27, 1
      %p134 = por %p132, %p133
      %p136 = scmp.ne.s32.totalorder %s121, %s135
      %p137 = scmp.eq.s32.totalorder %s27, 0
      %p138 = por %p136, %p137
      %s140 = sadd.s32 %s139, 1
      %p143 = scmp.eq.s32.totalorder %s21, 1
      %p144 = scmp.ne.s32.totalorder %s139, %s141
      %p145 = scmp.eq.s32.totalorder %s21, 0
      %p146 = por %p144, %p145
      %p147 = scmp.ne.s32.totalorder %s139, %s141
      %p148 = scmp.eq.s32.totalorder %s26, 1
      %p149 = por %p147, %p148
      %p150 = scmp.ne.s32.totalorder %s141, %s142
      %p151 = scmp.eq.s32.totalorder %s26, 0
      %p152 = por %p150, %p151
      %p153 = scmp.ne.s32.totalorder %s141, %s142
      %p154 = scmp.eq.s32.totalorder %s27, 1
      %p155 = por %p153, %p154
      %p157 = scmp.ne.s32.totalorder %s142, %s156
      %p158 = scmp.eq.s32.totalorder %s27, 0
      %p159 = por %p157, %p158
      %s161 = sadd.s32 %s160, 1
      %p164 = scmp.eq.s32.totalorder %s21, 1
      %p165 = scmp.ne.s32.totalorder %s160, %s162
      %p166 = scmp.eq.s32.totalorder %s21, 0
      %p167 = por %p165, %p166
      %p168 = scmp.ne.s32.totalorder %s160, %s162
      %p169 = scmp.eq.s32.totalorder %s26, 1
      %p170 = por %p168, %p169
      %p171 = scmp.ne.s32.totalorder %s162, %s163
      %p172 = scmp.eq.s32.totalorder %s26, 0
      %p173 = por %p171, %p172
      %p174 = scmp.ne.s32.totalorder %s162, %s163
      %p175 = scmp.eq.s32.totalorder %s27, 1
      %p176 = por %p174, %p175
      %p178 = scmp.ne.s32.totalorder %s163, %s177
      %p179 = scmp.eq.s32.totalorder %s27, 0
      %p180 = por %p178, %p179
      %s181 = ssub.s32 %s21, %s28
      %p182 = scmp.eq.s32.totalorder %s181, 0
      %s184 = sadd.s32 %s183, 1
      %s185 = scalar_select %p182, %s183, %s184
      %p188 = pneg %p182
      %p189 = scmp.eq.s32.totalorder %s21, 1
      %p190 = por %p188, %p189
      %p191 = scmp.ne.s32.totalorder %s183, %s186
      %p192 = scmp.eq.s32.totalorder %s21, 0
      %p193 = por %p191, %p192
      %p194 = scmp.ne.s32.totalorder %s183, %s186
      %p195 = scmp.eq.s32.totalorder %s26, 1
      %p196 = por %p194, %p195
      %p197 = scmp.ne.s32.totalorder %s186, %s187
      %p198 = scmp.eq.s32.totalorder %s26, 0
      %p199 = por %p197, %p198
      %p200 = scmp.ne.s32.totalorder %s186, %s187
      %p201 = scmp.eq.s32.totalorder %s27, 1
      %p202 = por %p200, %p201
      %p204 = scmp.ne.s32.totalorder %s187, %s203
      %p205 = scmp.eq.s32.totalorder %s27, 0
      %p206 = por %p204, %p205
      %p207 = scmp.le.s32.totalorder 1, %s21
      %p208 = scmp.lt.s32.totalorder %s21, 3
      %p209 = pnand %p207, %p208
      %p210 = pneg %p209
      // Predicated region
      $region9: #{tpu_custom_call.1} parent=5 // pred_check
        _
      $region10: #{tpu_custom_call.1} parent=5 // pred_check_branch
        %212 = sbr.rel (%p209) target = $region12
      $region11: #{tpu_custom_call.1} parent=5 // pred_region
        %s213 = ssub.s32 %s21, 1
        // Predicated region
        $region13: #{tpu_custom_call.1} parent=11 // pred_check
          %p214 = pneg %p68
        $region14: #{tpu_custom_call.1} parent=11 // pred_check_branch
          %216 = sbr.rel (%p214) target = $region16
        $region15: #{tpu_custom_call.1} parent=11 // pred_region
          %218 = vsyncadd [#allocation6], 0
          %s219 = sshll.u32 %s1, 4
          %s220 = int_to_ptr.hbm [resolvable:$true] %s219
          %s221 = sshll.u32 [#allocation5], 4
          %s222 = int_to_ptr.vmem [resolvable:$true] %s221
          %227 = dma.hbm_to_vmem [thread:$0]  %s220, 512, %s222, [#allocation6], 256, 128, 8
        $region16: #{tpu_custom_call.1} parent=11 // pred_fallthru
          _
        // Predicated region
        $region17: #{tpu_custom_call.1} parent=11 // pred_check
          %p228 = pneg %p89
        $region18: #{tpu_custom_call.1} parent=11 // pred_check_branch
          %230 = sbr.rel (%p228) target = $region20
        $region19: #{tpu_custom_call.1} parent=11 // pred_region
          %232 = vsyncadd [#allocation6], 0
          %s233 = scalar_lea.hbm %s2, 8
          %s234 = sshll.u32 %s233, 4
          %s235 = int_to_ptr.hbm [resolvable:$true] %s234
          %s236 = sshll.u32 [#allocation7], 4
          %s237 = int_to_ptr.vmem [resolvable:$true] %s236
          %242 = dma.hbm_to_vmem [thread:$0]  %s235, 512, %s237, [#allocation6], 256, 128, 8
        $region20: #{tpu_custom_call.1} parent=11 // pred_fallthru
          _
        // Predicated region
        $region21: #{tpu_custom_call.1} parent=11 // pred_check
          %p243 = pneg %p110
        $region22: #{tpu_custom_call.1} parent=11 // pred_check_branch
          %245 = sbr.rel (%p243) target = $region24
        $region23: #{tpu_custom_call.1} parent=11 // pred_region
          _
        $region24: #{tpu_custom_call.1} parent=11 // pred_fallthru
          _
        // Predicated region
        $region25: #{tpu_custom_call.1} parent=11 // pred_check
          %p246 = pneg %p131
        $region26: #{tpu_custom_call.1} parent=11 // pred_check_branch
          %248 = sbr.rel (%p246) target = $region28
        $region27: #{tpu_custom_call.1} parent=11 // pred_region
          %250 = vsyncadd [#allocation9], 0
          %s251 = scalar_lea.hbm %s4, 1
          %s253 = sshll.u32 %s251, 4
          %s254 = int_to_ptr.hbm [resolvable:$true] %s253
          %s255 = sshll.u32 [#allocation8], 4
          %s256 = int_to_ptr.vmem [resolvable:$true] %s255
          %258 = dma.hbm_to_vmem [thread:$0]  %s254, 16, %s256, [#allocation9]
        $region28: #{tpu_custom_call.1} parent=11 // pred_fallthru
          _
        // Predicated region
        $region29: #{tpu_custom_call.1} parent=11 // pred_check
          %p259 = pneg %p152
        $region30: #{tpu_custom_call.1} parent=11 // pred_check_branch
          %261 = sbr.rel (%p259) target = $region32
        $region31: #{tpu_custom_call.1} parent=11 // pred_region
          %263 = vsyncadd [#allocation9], 0
          %s264 = sshll.u32 %s5, 4
          %s265 = int_to_ptr.hbm [resolvable:$true] %s264
          %s266 = sshll.u32 [#allocation10], 4
          %s267 = int_to_ptr.vmem [resolvable:$true] %s266
          %272 = dma.hbm_to_vmem [thread:$0]  %s265, 2048, %s267, [#allocation9], 128, 128, 8
        $region32: #{tpu_custom_call.1} parent=11 // pred_fallthru
          _
        // Predicated region
        $region33: #{tpu_custom_call.1} parent=11 // pred_check
          %p273 = pneg %p173
        $region34: #{tpu_custom_call.1} parent=11 // pred_check_branch
          %275 = sbr.rel (%p273) target = $region36
        $region35: #{tpu_custom_call.1} parent=11 // pred_region
          _
        $region36: #{tpu_custom_call.1} parent=11 // pred_fallthru
          _
      $region12: #{tpu_custom_call.1} parent=5 // pred_fallthru
        _
      %p276 = scmp.lt.s32.totalorder %s21, 2
      // Predicated region
      $region37: #{tpu_custom_call.1} parent=5 // pred_check
        %p277 = pneg %p276
      $region38: #{tpu_custom_call.1} parent=5 // pred_check_branch
        %279 = sbr.rel (%p277) target = $region40
      $region39: #{tpu_custom_call.1} parent=5 // pred_region
        // Predicated region
        $region41: #{tpu_custom_call.1} parent=39 // pred_check
          %p280 = pneg %p41
        $region42: #{tpu_custom_call.1} parent=39 // pred_check_branch
          %282 = sbr.rel (%p280) target = $region44
        $region43: #{tpu_custom_call.1} parent=39 // pred_region
          %s283 = sand.u32 %s31, 1
          %s284 = scalar_lea.sflag [#allocation3], %s283
          %s285 = sand.u32 %s31, 1
          %s286 = smul.addr %s285, 8
          %s287 = scalar_lea.vmem [#allocation2], %s286
          %289 = vsyncadd %s284, 0
          %s290 = smul.addr %s21, 8
          %s291 = scalar_lea.hbm %s0, %s290
          %s293 = sshll.u32 %s291, 4
          %s294 = int_to_ptr.hbm [resolvable:$true] %s293
          %s295 = sshll.u32 %s287, 4
          %s296 = int_to_ptr.vmem [resolvable:$true] %s295
          %298 = dma.hbm_to_vmem [thread:$0]  %s294, 128, %s296, %s284
        $region44: #{tpu_custom_call.1} parent=39 // pred_fallthru
          _
      $region40: #{tpu_custom_call.1} parent=5 // pred_fallthru
        _
      %p299 = scmp.le.s32.totalorder 1, %s21
      %p300 = scmp.lt.s32.totalorder %s21, 3
      %p301 = pnand %p299, %p300
      %p302 = pneg %p301
      // Predicated region
      $region45: #{tpu_custom_call.1} parent=5 // pred_check
        _
      $region46: #{tpu_custom_call.1} parent=5 // pred_check_branch
        %304 = sbr.rel (%p301) target = $region48
      $region47: #{tpu_custom_call.1} parent=5 // pred_region
        %s305 = ssub.s32 %s21, 1
        %s306 = sand.u32 %s34, 1
        %s307 = scalar_lea.sflag [#allocation3], %s306
        %s308 = sand.u32 %s34, 1
        %s309 = smul.addr %s308, 8
        %s310 = scalar_lea.vmem [#allocation2], %s309
        // Predicated region
        $region49: #{tpu_custom_call.1} parent=47 // pred_check
          %p311 = pneg %p47
        $region50: #{tpu_custom_call.1} parent=47 // pred_check_branch
          %313 = sbr.rel (%p311) target = $region52
        $region51: #{tpu_custom_call.1} parent=47 // pred_region
          %315 = dma.done %s307, 128
        $region52: #{tpu_custom_call.1} parent=47 // pred_fallthru
          _
        // Predicated region
        $region53: #{tpu_custom_call.1} parent=47 // pred_check
          %p316 = pneg %p68
        $region54: #{tpu_custom_call.1} parent=47 // pred_check_branch
          %318 = sbr.rel (%p316) target = $region56
        $region55: #{tpu_custom_call.1} parent=47 // pred_region
          %320 = dma.done [#allocation6], 512
        $region56: #{tpu_custom_call.1} parent=47 // pred_fallthru
          _
        // Predicated region
        $region57: #{tpu_custom_call.1} parent=47 // pred_check
          %p321 = pneg %p89
        $region58: #{tpu_custom_call.1} parent=47 // pred_check_branch
          %323 = sbr.rel (%p321) target = $region60
        $region59: #{tpu_custom_call.1} parent=47 // pred_region
          %325 = dma.done [#allocation6], 512
        $region60: #{tpu_custom_call.1} parent=47 // pred_fallthru
          _
        // Predicated region
        $region61: #{tpu_custom_call.1} parent=47 // pred_check
          %p326 = pneg %p131
        $region62: #{tpu_custom_call.1} parent=47 // pred_check_branch
          %328 = sbr.rel (%p326) target = $region64
        $region63: #{tpu_custom_call.1} parent=47 // pred_region
          %330 = dma.done [#allocation9], 16
        $region64: #{tpu_custom_call.1} parent=47 // pred_fallthru
          _
        // Predicated region
        $region65: #{tpu_custom_call.1} parent=47 // pred_check
          %p331 = pneg %p152
        $region66: #{tpu_custom_call.1} parent=47 // pred_check_branch
          %333 = sbr.rel (%p331) target = $region68
        $region67: #{tpu_custom_call.1} parent=47 // pred_region
          %335 = dma.done [#allocation9], 2048
        $region68: #{tpu_custom_call.1} parent=47 // pred_fallthru
          _
        %s336 = sand.u32 %s34, 1
        %s337 = scalar_lea.sflag [#allocation3], %s336
        %s338 = sand.u32 %s34, 1
        %s339 = smul.addr %s338, 8
        %s340 = scalar_lea.vmem [#allocation2], %s339
        %p341 = pneg %p47
        %p342 = pneg %p44
        %p343 = pneg %p68
        %p344 = pneg %p65
        %p345 = pneg %p89
        %p346 = pneg %p86
        %p347 = pneg %p110
        %p348 = pneg %p107
        %p349 = pneg %p131
        %p350 = pneg %p128
        %p351 = pneg %p152
        %p352 = pneg %p149
        %p353 = pneg %p173
        %p354 = pneg %p170
        %p355 = pneg %p199
        %p356 = pneg %p196
        %s357 = sand.u32 %s186, 1
        %s358 = scalar_lea.sflag [#allocation4], %s357
        %s359 = sand.u32 %s186, 1
        %s360 = smul.addr %s359, 8
        %s361 = scalar_lea.vmem [#allocation11], %s360
        %v362 = vld [vmem:[%s310] sm:$0xff]
        %v363 = vld [vmem:[#allocation5] sm:$0xff]
        %v364 = vld [vmem:[#allocation5 + $0x8] sm:$0xff]
        %v365 = vld [vmem:[#allocation5 + $0x10] sm:$0xff]
        %v366 = vld [vmem:[#allocation5 + $0x18] sm:$0xff]
        %v367 = vld [vmem:[%s3] sm:$0x1]
        %v369 = vperm.slane %v367, 0
        %vm371 = vcmask 261120
        %v373 = vsel %vm371, %v362, 0
        %375 = vmatpush.msra.mxu0 0.0
        %376 = vmatpush.msra.mxu0 0.0
        %377 = vmatpush.msra.mxu0 0.0
        %378 = vmatpush.msra.mxu0 0.0
        %379 = vmatpush.msra.mxu0 0.0
        %380 = vmatpush.msra.mxu0 0.0
        %381 = vmatpush.msra.mxu0 0.0
        %382 = vmatpush.msra.mxu0 0.0
        %383 = vmatpush.msra.mxu0 0.0
        %384 = vmatpush.msra.mxu0 0.0
        %385 = vmatpush.msra.mxu0 0.0
        %386 = vmatpush.msra.mxu0 0.0
        %387 = vmatpush.msra.mxu0 %v366
        %388 = vmatpush.msra.mxu0 %v365
        %389 = vmatpush.msra.mxu0 %v364
        %390 = vmatpush.msra.mxu0 %v363
        %391 = vmatmul.f32.gmra.mxu0 %v373
        %v392 = vpop.f32.mrf.mxu0
        %v393 = vadd.f32 %v369, %v392
        %394 = vdwg.mxu0
        %v395 = vld [vmem:[#allocation7] sm:$0xff]
        %v396 = vld [vmem:[#allocation7 + $0x8] sm:$0xff]
        %v397 = vld [vmem:[#allocation7 + $0x10] sm:$0xff]
        %v398 = vld [vmem:[#allocation7 + $0x18] sm:$0xff]
        %v399 = vld [vmem:[#allocation8] sm:$0x1]
        %v401 = vperm.slane %v399, 0
        %403 = vmatpush.msra.mxu0 0.0
        %404 = vmatpush.msra.mxu0 0.0
        %405 = vmatpush.msra.mxu0 0.0
        %406 = vmatpush.msra.mxu0 0.0
        %407 = vmatpush.msra.mxu0 0.0
        %408 = vmatpush.msra.mxu0 0.0
        %409 = vmatpush.msra.mxu0 0.0
        %410 = vmatpush.msra.mxu0 0.0
        %411 = vmatpush.msra.mxu0 0.0
        %412 = vmatpush.msra.mxu0 0.0
        %413 = vmatpush.msra.mxu0 0.0
        %414 = vmatpush.msra.mxu0 0.0
        %415 = vmatpush.msra.mxu0 %v398
        %416 = vmatpush.msra.mxu0 %v397
        %417 = vmatpush.msra.mxu0 %v396
        %418 = vmatpush.msra.mxu0 %v395
        %419 = vmatmul.f32.gmra.mxu0 %v373
        %v420 = vpop.f32.mrf.mxu0
        %v421 = vadd.f32 %v401, %v420
        %422 = vdwg.mxu0
        %v423 = vmul.f32 %v421, 0.5
        %v424 = vmul.f32 %v421, 0.70710677
        %v425 = vmul.f32 %v424, %v424
        %v426 = vmin.f32 16.0, %v425
        %v427 = vmul.f32 %v426, 2.1237322e-06
        %v428 = vadd.f32 %v427, 0.00028619796
        %v429 = vmul.f32 %v426, %v428
        %v430 = vadd.f32 %v429, 0.0036580483
        %v431 = vmul.f32 %v426, %v430
        %v432 = vadd.f32 %v431, 0.05243302
        %v433 = vmul.f32 %v426, %v432
        %v434 = vadd.f32 %v433, 0.18741608
        %v435 = vmul.f32 %v426, %v434
        %v436 = vadd.f32 %v435, 1.1283791
        %v437 = vmul.f32 %v424, %v436
        %v438 = vmul.f32 %v426, 3.8918573e-05
        %v439 = vadd.f32 %v438, 0.001143296
        %v440 = vmul.f32 %v426, %v439
        %v441 = vadd.f32 %v440, 0.014752088
        %v442 = vmul.f32 %v426, %v441
        %v443 = vadd.f32 %v442, 0.112945676
        %v444 = vmul.f32 %v426, %v443
        %v445 = vadd.f32 %v444, 0.4994258
        %v446 = vmul.f32 %v426, %v445
        %v447 = vadd.f32 %v446, 1.0
        %v448 = vrcp.pop %v447
        %v449 = vmul.f32 %v447, %v448
        %v450 = vsub.f32 1.0, %v449
        %v451 = vmul.f32 %v448, %v450
        %v452 = vadd.f32 %v448, %v451
        %vm453 = vweird.f32 %v447
        %vm454 = vweird.f32 %v448
        %vm455 = vmor %vm453, %vm454
        %v456 = vsel %vm455, %v448, %v452
        %v457 = vand.u32 2147483647, %v447
        %vm458 = vcmp.eq.f32.partialorder %v457, 8.507059e+37
        %v459 = vand.u32 %v447, 2147483648
        %v460 = vor.u32 1.1754944e-38, %v459
        %v461 = vsel %vm458, %v460, %v456
        %v462 = vmul.f32 %v437, %v461
        %v463 = vmin.f32 %v462, 1.0
        %v464 = vmax.f32 %v463, -1.0
        %v465 = vadd.f32 %v464, 1.0
        %v466 = vmul.f32 %v423, %v465
        %v467 = vmul.f32 %v393, %v466
        %v468 = vld [vmem:[#allocation10] sm:$0xff]
        %v469 = vld [vmem:[#allocation10 + $0x8] sm:$0xff]
        %v470 = vld [vmem:[#allocation10 + $0x10] sm:$0xff]
        %v471 = vld [vmem:[#allocation10 + $0x18] sm:$0xff]
        %v472 = vld [vmem:[#allocation10 + $0x20] sm:$0xff]
        %v473 = vld [vmem:[#allocation10 + $0x28] sm:$0xff]
        %v474 = vld [vmem:[#allocation10 + $0x30] sm:$0xff]
        %v475 = vld [vmem:[#allocation10 + $0x38] sm:$0xff]
        %v476 = vld [vmem:[#allocation10 + $0x40] sm:$0xff]
        %v477 = vld [vmem:[#allocation10 + $0x48] sm:$0xff]
        %v478 = vld [vmem:[#allocation10 + $0x50] sm:$0xff]
        %v479 = vld [vmem:[#allocation10 + $0x58] sm:$0xff]
        %v480 = vld [vmem:[#allocation10 + $0x60] sm:$0xff]
        %v481 = vld [vmem:[#allocation10 + $0x68] sm:$0xff]
        %v482 = vld [vmem:[#allocation10 + $0x70] sm:$0xff]
        %v483 = vld [vmem:[#allocation10 + $0x78] sm:$0xff]
        %v484 = vld [vmem:[%s6] sm:$0x1]
        %v486 = vperm.slane %v484, 0
        %488 = vmatpush.msra.mxu0 %v483
        %489 = vmatpush.msra.mxu0 %v482
        %490 = vmatpush.msra.mxu0 %v481
        %491 = vmatpush.msra.mxu0 %v480
        %492 = vmatpush.msra.mxu0 %v479
        %493 = vmatpush.msra.mxu0 %v478
        %494 = vmatpush.msra.mxu0 %v477
        %495 = vmatpush.msra.mxu0 %v476
        %496 = vmatpush.msra.mxu0 %v475
        %497 = vmatpush.msra.mxu0 %v474
        %498 = vmatpush.msra.mxu0 %v473
        %499 = vmatpush.msra.mxu0 %v472
        %500 = vmatpush.msra.mxu0 %v471
        %501 = vmatpush.msra.mxu0 %v470
        %502 = vmatpush.msra.mxu0 %v469
        %503 = vmatpush.msra.mxu0 %v468
        %504 = vmatmul.f32.gmra.mxu0 %v467
        %v505 = vpop.f32.mrf.mxu0
        %v506 = vadd.f32 %v486, %v505
        %507 = vdwg.mxu0
        %508 = vst [vmem:[%s361] sm:$0xff] %v506
        %s509 = sand.u32 %s186, 1
        %s510 = scalar_lea.sflag [#allocation4], %s509
        %s511 = sand.u32 %s186, 1
        %s512 = smul.addr %s511, 8
        %s513 = scalar_lea.vmem [#allocation11], %s512
        // Predicated region
        $region69: #{tpu_custom_call.1} parent=47 // pred_check
          %p514 = pneg %p196
        $region70: #{tpu_custom_call.1} parent=47 // pred_check_branch
          %516 = sbr.rel (%p514) target = $region72
        $region71: #{tpu_custom_call.1} parent=47 // pred_region
          %518 = vsyncadd %s510, 0
          %s519 = smul.addr %s26, 8
          %s520 = scalar_lea.hbm %s7, %s519
          %s522 = sshll.u32 %s513, 4
          %s523 = int_to_ptr.vmem [resolvable:$true] %s522
          %s524 = sshll.u32 %s520, 4
          %s525 = int_to_ptr.hbm [resolvable:$true] %s524
          %527 = dma.vmem_to_hbm [thread:$0]  %s523, 128, %s525, %s510
        $region72: #{tpu_custom_call.1} parent=47 // pred_fallthru
          _
      $region48: #{tpu_custom_call.1} parent=5 // pred_fallthru
        _
      %p528 = scmp.le.s32.totalorder 2, %s21
      // Predicated region
      $region73: #{tpu_custom_call.1} parent=5 // pred_check
        %p529 = pneg %p528
      $region74: #{tpu_custom_call.1} parent=5 // pred_check_branch
        %531 = sbr.rel (%p529) target = $region76
      $region75: #{tpu_custom_call.1} parent=5 // pred_region
        %s532 = ssub.s32 %s21, 2
        // Predicated region
        $region77: #{tpu_custom_call.1} parent=75 // pred_check
          %p533 = pneg %p202
        $region78: #{tpu_custom_call.1} parent=75 // pred_check_branch
          %535 = sbr.rel (%p533) target = $region80
        $region79: #{tpu_custom_call.1} parent=75 // pred_region
          %s536 = sand.u32 %s187, 1
          %s537 = scalar_lea.sflag [#allocation4], %s536
          %s538 = sand.u32 %s187, 1
          %s539 = smul.addr %s538, 8
          %s540 = scalar_lea.vmem [#allocation11], %s539
          %542 = dma.done %s537, 128
        $region80: #{tpu_custom_call.1} parent=75 // pred_fallthru
          _
      $region76: #{tpu_custom_call.1} parent=5 // pred_fallthru
        _
    $region6: #{tpu_custom_call.1} parent=1 // loop_footer
      %s25 = sadd.s32 1, %s21
    $region7: #{tpu_custom_call.1} parent=1 // loop_footer_branch
      %20 = sbr.rel target = $region3
    $region8: #{tpu_custom_call.1} parent=1 // loop_exit
      _
    %543 = vsyncpa [#allocation3], 1
    %s544 = scalar_lea.sflag [#allocation3], 1
    %545 = vsyncpa %s544, 1
    %546 = vsyncpa [#allocation6], 1
    %547 = vsyncpa [#allocation9], 1
    %548 = vsyncpa [#allocation4], 1
    %s549 = scalar_lea.sflag [#allocation4], 1
    %550 = vsyncpa %s549, 1

</llo_original>
